<compile_context>
chip_gen: v5e
topology: v5e:2x2
jax: 0.10.0
libtpu: 0.0.40
codegen_flags: <defaults>
</compile_context>

<pallas_src>
import numpy as np
import jax
import jax.numpy as jnp
from jax.experimental import pallas as pl
from jax.experimental.pallas import tpu as pltpu


def _make_dark_block_kernel(TH, W, C, Cmid):
    HW = TH * W
    HEXT = (TH + 2) * W  # main rows + 1 halo row above + 1 halo row below

    def kernel(x_ref, xtop_ref, xbot_ref, w1_ref, b1_ref, w2_ref, b2_ref,
               out_ref):
        # x_ref:    (1, TH, W, C)  main rows of this tile
        # xtop_ref: (1, 1,  W, C)  row above the tile (clamped at image top)
        # xbot_ref: (1, 1,  W, C)  row below the tile (clamped at image bottom)
        # w1_ref:   (C, Cmid)      1x1 conv weights with BN1 scale folded in
        # b1_ref:   (1, Cmid)      folded BN1 bias
        # w2_ref:   (9*Cmid, C)    3x3 conv weights (dy,dx,m major->minor),
        #                          BN2 scale folded in
        # b2_ref:   (1, C)         folded BN2 bias
        t = pl.program_id(1)
        last = pl.num_programs(1) - 1

        x_main = x_ref[0].astype(jnp.float32)            # (TH, W, C)
        x_top = xtop_ref[0].astype(jnp.float32)          # (1, W, C)
        x_bot = xbot_ref[0].astype(jnp.float32)          # (1, W, C)

        x_ext = jnp.concatenate([x_top, x_main, x_bot], axis=0)  # (TH+2, W, C)
        x_ext2d = x_ext.reshape(HEXT, C)

        # ---- layer1: 1x1 conv (scale-fused) + bias + LeakyReLU --------------
        h = jnp.dot(x_ext2d, w1_ref[...], preferred_element_type=jnp.float32)
        h = h + b1_ref[...]
        h = jnp.where(h > 0, h, 0.01 * h)                 # (HEXT, Cmid)

        # Zero-pad h (conv2's input) at the image top/bottom: the halo rows at
        # the true image boundary must be zeros of h, not conv1(clamped row).
        row_idx = jax.lax.broadcasted_iota(jnp.int32, (HEXT, 1), 0)
        keep = jnp.logical_and(
            jnp.logical_or(t > 0, row_idx >= W),
            jnp.logical_or(t < last, row_idx < (TH + 1) * W))
        h = jnp.where(keep, h, 0.0)

        # ---- layer2: 3x3 conv (pad=1) as one big-K matmul -------------------
        # In flattened row-major (row, W) space a shift of dx-1 along W is a
        # shift of dx-1 in the flat index; the wrap-around positions (w == 0
        # for dx == 0, w == W-1 for dx == 2) are masked to zero, which exactly
        # implements zero padding along W.
        zpix = jnp.zeros((1, Cmid), jnp.float32)
        hz = jnp.concatenate([zpix, h, zpix], axis=0)     # (HEXT + 2, Cmid)

        w_idx = jax.lax.broadcasted_iota(jnp.int32, (HW, 1), 0) % W
        not_first_col = w_idx != 0          # valid positions for dx == 0 taps
        not_last_col = w_idx != (W - 1)     # valid positions for dx == 2 taps

        cols = []
        for dy in range(3):
            for dx in range(3):
                s = dy * W + dx             # static, non-negative flat offset
                win = hz[s:s + HW, :]       # (HW, Cmid) contiguous slice
                if dx == 0:
                    win = jnp.where(not_first_col, win, 0.0)
                elif dx == 2:
                    win = jnp.where(not_last_col, win, 0.0)
                cols.append(win)
        slab = jnp.concatenate(cols, axis=1)              # (HW, 9*Cmid)

        out = jnp.dot(slab, w2_ref[...], preferred_element_type=jnp.float32)
        out = out + b2_ref[...]
        out = jnp.where(out > 0, out, 0.01 * out)         # (HW, C)

        # ---- residual add ---------------------------------------------------
        out = out + x_main.reshape(HW, C)
        out_ref[0] = out.reshape(TH, W, C).astype(out_ref.dtype)

    return kernel


def dark_residual_block_nhwc(x_nhwc, w1, w2, scale1, bias1, scale2, bias2,
                             *, row_tile=None):
    N, H, W, C = x_nhwc.shape
    Cmid = w1.shape[1]
    if row_tile is None:
        row_tile = 8 if H % 8 == 0 else H
    TH = row_tile
    assert H % TH == 0, "row_tile must divide H"
    nT = H // TH

    # Fold BN scales into the conv weights (conv is linear in its weights);
    # kernel only adds the folded bias.
    w1f = (w1.astype(jnp.float32) * scale1[None, :].astype(jnp.float32))
    w2f = (w2.astype(jnp.float32) *
           scale2[None, None, None, :].astype(jnp.float32)).reshape(9 * Cmid, C)
    b1 = bias1.reshape(1, Cmid).astype(jnp.float32)
    b2 = bias2.reshape(1, C).astype(jnp.float32)

    kernel = _make_dark_block_kernel(TH, W, C, Cmid)

    return pl.pallas_call(
        kernel,
        out_shape=jax.ShapeDtypeStruct((N, H, W, C), x_nhwc.dtype),
        grid_spec=pltpu.PrefetchScalarGridSpec(
            num_scalar_prefetch=0,
            grid=(N, nT),
            in_specs=[
                # main rows of the tile
                pl.BlockSpec((1, TH, W, C), lambda n, t: (n, t, 0, 0)),
                # 1-row halo above (clamped; zeroed in-kernel at image top)
                pl.BlockSpec((1, 1, W, C),
                             lambda n, t: (n, jnp.maximum(t * TH - 1, 0), 0, 0)),
                # 1-row halo below (clamped; zeroed in-kernel at image bottom)
                pl.BlockSpec((1, 1, W, C),
                             lambda n, t: (n, jnp.minimum((t + 1) * TH, H - 1),
                                           0, 0)),
                pl.BlockSpec((C, Cmid), lambda n, t: (0, 0)),
                pl.BlockSpec((1, Cmid), lambda n, t: (0, 0)),
                pl.BlockSpec((9 * Cmid, C), lambda n, t: (0, 0)),
                pl.BlockSpec((1, C), lambda n, t: (0, 0)),
            ],
            out_specs=pl.BlockSpec((1, TH, W, C), lambda n, t: (n, t, 0, 0)),
        ),
        compiler_params=pltpu.CompilerParams(
            dimension_semantics=("parallel", "parallel"),
            vmem_limit_bytes=32 * 1024 * 1024),
    )(x_nhwc, x_nhwc, x_nhwc, w1f, b1, w2f, b2)


def dark_residual_block_nchw(x_nchw, params, *, row_tile=None):
    """Matches the PyTorch module's NCHW interface."""
    x_nhwc = jnp.transpose(x_nchw, (0, 2, 3, 1))
    y_nhwc = dark_residual_block_nhwc(x_nhwc, *params, row_tile=row_tile)
    return jnp.transpose(y_nhwc, (0, 3, 1, 2))


def reference_nhwc(x_nhwc, w1, w2, s1, b1, s2, b2):
    N, H, W, C = x_nhwc.shape
    Cmid = w1.shape[1]
    h = jax.lax.conv_general_dilated(
        x_nhwc, w1.reshape(1, 1, C, Cmid), (1, 1), 'VALID',
        dimension_numbers=('NHWC', 'HWIO', 'NHWC'))
    h = h * s1.reshape(1, 1, 1, Cmid) + b1.reshape(1, 1, 1, Cmid)
    h = jnp.where(h > 0, h, 0.01 * h)
    o = jax.lax.conv_general_dilated(
        h, w2, (1, 1), 'SAME', dimension_numbers=('NHWC', 'HWIO', 'NHWC'))
    o = o * s2.reshape(1, 1, 1, C) + b2.reshape(1, 1, 1, C)
    o = jnp.where(o > 0, o, 0.01 * o)
    return o + x_nhwc


if __name__ == "__main__":
    key = jax.random.PRNGKey(0)
    ks = jax.random.split(key, 12)

    N, C, H, W = 2, 16, 8, 8          # NCHW, as the PyTorch module expects
    Cmid = C // 2
    eps = 1e-5

    x_nchw = jax.random.normal(ks[0], (N, C, H, W), jnp.float32)

    # Conv weights (HWIO / (Cin, Cout) for the 1x1), deterministic synthetic init.
    w1 = 0.1 * jax.random.normal(ks[1], (C, Cmid), jnp.float32)
    w2 = 0.1 * jax.random.normal(ks[2], (3, 3, Cmid, C), jnp.float32)

    # Synthetic BatchNorm params, folded into affine scale/bias (inference form).
    gamma1 = 1.0 + 0.1 * jax.random.normal(ks[3], (Cmid,), jnp.float32)
    beta1 = 0.1 * jax.random.normal(ks[4], (Cmid,), jnp.float32)
    mean1 = 0.1 * jax.random.normal(ks[5], (Cmid,), jnp.float32)
    var1 = jax.random.uniform(ks[6], (Cmid,), jnp.float32, 0.5, 1.5)
    gamma2 = 1.0 + 0.1 * jax.random.normal(ks[7], (C,), jnp.float32)
    beta2 = 0.1 * jax.random.normal(ks[8], (C,), jnp.float32)
    mean2 = 0.1 * jax.random.normal(ks[9], (C,), jnp.float32)
    var2 = jax.random.uniform(ks[10], (C,), jnp.float32, 0.5, 1.5)

    scale1 = gamma1 / jnp.sqrt(var1 + eps)
    bias1 = beta1 - mean1 * scale1
    scale2 = gamma2 / jnp.sqrt(var2 + eps)
    bias2 = beta2 - mean2 * scale2

    params = (w1, w2, scale1, bias1, scale2, bias2)

    # row_tile=4 -> grid (N, H//4) = (2, 2): exercises the halo row-tiling and
    # gives multiple independent "parallel" grid steps per batch element.
    out_nchw = dark_residual_block_nchw(x_nchw, params, row_tile=4)
    out_nchw = jax.block_until_ready(out_nchw)

    # Correctness check against a pure-JAX reference.
    x_nhwc = jnp.transpose(x_nchw, (0, 2, 3, 1))
    ref_nchw = jnp.transpose(reference_nhwc(x_nhwc, *params), (0, 3, 1, 2))
    np.testing.assert_allclose(np.asarray(out_nchw), np.asarray(ref_nchw),
                               rtol=1e-4, atol=1e-4)

    print("KERNEL_OK")
</pallas_src>

<mosaic_0001>
module attributes {stable_mosaic.version = 11 : i64} {
  func.func @kernel(%arg0: i32, %arg1: i32, %arg2: memref<1x4x8x16xf32, #tpu.memory_space<vmem>>, %arg3: memref<1x1x8x16xf32, #tpu.memory_space<vmem>>, %arg4: memref<1x1x8x16xf32, #tpu.memory_space<vmem>>, %arg5: memref<16x8xf32, #tpu.memory_space<vmem>>, %arg6: memref<1x8xf32, #tpu.memory_space<vmem>>, %arg7: memref<72x16xf32, #tpu.memory_space<vmem>>, %arg8: memref<1x16xf32, #tpu.memory_space<vmem>>, %arg9: memref<1x4x8x16xf32, #tpu.memory_space<vmem>>) attributes {dimension_semantics = [#tpu.dimension_semantics<parallel>, #tpu.dimension_semantics<parallel>], iteration_bounds = array<i64: 2, 2>, scalar_prefetch = 0 : i64, scratch_operands = 0 : i64, tpu.core_type = #tpu.core_type<tc>, window_params = [{transform_indices = @transform_0, window_bounds = array<i64: 1, 4, 8, 16>}, {transform_indices = @transform_1, window_bounds = array<i64: 1, 1, 8, 16>}, {transform_indices = @transform_2, window_bounds = array<i64: 1, 1, 8, 16>}, {pipeline_mode = #tpu.pipeline_mode<synchronous>, transform_indices = @transform_3, window_bounds = array<i64: 16, 8>}, {pipeline_mode = #tpu.pipeline_mode<synchronous>, transform_indices = @transform_4, window_bounds = array<i64: 1, 8>}, {pipeline_mode = #tpu.pipeline_mode<synchronous>, transform_indices = @transform_5, window_bounds = array<i64: 72, 16>}, {pipeline_mode = #tpu.pipeline_mode<synchronous>, transform_indices = @transform_6, window_bounds = array<i64: 1, 16>}, {transform_indices = @transform_7, window_bounds = array<i64: 1, 4, 8, 16>}]} {
    %c0 = arith.constant 0 : index
    %c0_0 = arith.constant 0 : index
    %c0_1 = arith.constant 0 : index
    %c0_2 = arith.constant 0 : index
    %0 = vector.load %arg2[%c0, %c0_0, %c0_1, %c0_2] : memref<1x4x8x16xf32, #tpu.memory_space<vmem>>, vector<1x4x8x16xf32>
    %1 = vector.shape_cast %0 : vector<1x4x8x16xf32> to vector<4x8x16xf32>
    %c0_3 = arith.constant 0 : index
    %c0_4 = arith.constant 0 : index
    %c0_5 = arith.constant 0 : index
    %c0_6 = arith.constant 0 : index
    %2 = vector.load %arg3[%c0_3, %c0_4, %c0_5, %c0_6] : memref<1x1x8x16xf32, #tpu.memory_space<vmem>>, vector<1x1x8x16xf32>
    %3 = vector.shape_cast %2 : vector<1x1x8x16xf32> to vector<1x8x16xf32>
    %c0_7 = arith.constant 0 : index
    %c0_8 = arith.constant 0 : index
    %c0_9 = arith.constant 0 : index
    %c0_10 = arith.constant 0 : index
    %4 = vector.load %arg4[%c0_7, %c0_8, %c0_9, %c0_10] : memref<1x1x8x16xf32, #tpu.memory_space<vmem>>, vector<1x1x8x16xf32>
    %5 = vector.shape_cast %4 : vector<1x1x8x16xf32> to vector<1x8x16xf32>
    %6 = tpu.concatenate %3, %1, %5 in 0 : vector<1x8x16xf32>, vector<4x8x16xf32>, vector<1x8x16xf32> -> vector<6x8x16xf32>
    %7 = vector.shape_cast %6 : vector<6x8x16xf32> to vector<48x16xf32>
    %c0_11 = arith.constant 0 : index
    %c0_12 = arith.constant 0 : index
    %8 = vector.load %arg5[%c0_11, %c0_12] : memref<16x8xf32, #tpu.memory_space<vmem>>, vector<16x8xf32>
    %cst = arith.constant dense<0.000000e+00> : vector<48x8xf32>
    %9 = tpu.matmul %7, %8, %cst {dimension_numbers = #tpu.dot_dimension_numbers<[1], [0], [0], [1], [0, 0, 1, 1], [], []>} : vector<48x16xf32>, vector<16x8xf32>, vector<48x8xf32> -> vector<48x8xf32>
    %c0_13 = arith.constant 0 : index
    %c0_14 = arith.constant 0 : index
    %10 = vector.load %arg6[%c0_13, %c0_14] : memref<1x8xf32, #tpu.memory_space<vmem>>, vector<1x8xf32>
    %11 = vector.broadcast %10 : vector<1x8xf32> to vector<48x8xf32>
    %12 = arith.addf %9, %11 : vector<48x8xf32>
    %cst_15 = arith.constant 0.000000e+00 : f32
    %13 = vector.broadcast %cst_15 : f32 to vector<48x8xf32>
    %14 = arith.cmpf ogt, %12, %13 : vector<48x8xf32>
    %cst_16 = arith.constant 0.00999999977 : f32
    %15 = vector.broadcast %cst_16 : f32 to vector<48x8xf32>
    %16 = arith.mulf %15, %12 : vector<48x8xf32>
    %17 = arith.select %14, %12, %16 : vector<48x8xi1>, vector<48x8xf32>
    %18 = tpu.iota {dimensions = array<i32: 0>} : vector<48x1xi32>
    %c0_i32 = arith.constant 0 : i32
    %19 = arith.cmpi sgt, %arg1, %c0_i32 : i32
    %c8_i32 = arith.constant 8 : i32
    %20 = vector.broadcast %c8_i32 : i32 to vector<48x1xi32>
    %21 = arith.cmpi sge, %18, %20 : vector<48x1xi32>
    %22 = vector.broadcast %19 : i1 to vector<48x1xi1>
    %23 = arith.ori %22, %21 : vector<48x1xi1>
    %c1_i32 = arith.constant 1 : i32
    %24 = arith.cmpi slt, %arg1, %c1_i32 : i32
    %c40_i32 = arith.constant 40 : i32
    %25 = vector.broadcast %c40_i32 : i32 to vector<48x1xi32>
    %26 = arith.cmpi slt, %18, %25 : vector<48x1xi32>
    %27 = vector.broadcast %24 : i1 to vector<48x1xi1>
    %28 = arith.ori %27, %26 : vector<48x1xi1>
    %29 = arith.andi %23, %28 : vector<48x1xi1>
    %cst_17 = arith.constant 0.000000e+00 : f32
    %30 = vector.shape_cast %29 : vector<48x1xi1> to vector<48x1xi1>
    %31 = vector.broadcast %30 : vector<48x1xi1> to vector<48x8xi1>
    %32 = vector.broadcast %cst_17 : f32 to vector<48x8xf32>
    %33 = arith.select %31, %17, %32 : vector<48x8xi1>, vector<48x8xf32>
    %cst_18 = arith.constant 0.000000e+00 : f32
    %34 = vector.broadcast %cst_18 : f32 to vector<1x8xf32>
    %35 = tpu.concatenate %34, %33, %34 in 0 : vector<1x8xf32>, vector<48x8xf32>, vector<1x8xf32> -> vector<50x8xf32>
    %36 = tpu.iota {dimensions = array<i32: 0>} : vector<32x1xi32>
    %c8_i32_19 = arith.constant 8 : i32
    %c0_i32_20 = arith.constant 0 : i32
    %37 = arith.cmpi eq, %c8_i32_19, %c0_i32_20 : i32
    %c1_i32_21 = arith.constant 1 : i32
    %38 = arith.select %37, %c1_i32_21, %c8_i32_19 : i32
    %39 = vector.broadcast %38 : i32 to vector<32x1xi32>
    %40 = arith.remsi %36, %39 : vector<32x1xi32>
    %c0_i32_22 = arith.constant 0 : i32
    %41 = vector.broadcast %c0_i32_22 : i32 to vector<32x1xi32>
    %42 = arith.cmpi ne, %40, %41 : vector<32x1xi32>
    %c0_i32_23 = arith.constant 0 : i32
    %43 = vector.broadcast %c0_i32_23 : i32 to vector<32x1xi32>
    %44 = arith.cmpi slt, %40, %43 : vector<32x1xi32>
    %c0_i32_24 = arith.constant 0 : i32
    %45 = arith.cmpi slt, %38, %c0_i32_24 : i32
    %46 = vector.broadcast %45 : i1 to vector<32x1xi1>
    %47 = vector.broadcast %46 : vector<32x1xi1> to vector<32x1xi1>
    %48 = arith.xori %44, %47 : vector<32x1xi1>
    %49 = arith.andi %48, %42 : vector<32x1xi1>
    %50 = vector.broadcast %38 : i32 to vector<32x1xi32>
    %51 = arith.addi %40, %50 : vector<32x1xi32>
    %52 = arith.select %49, %51, %40 : vector<32x1xi1>, vector<32x1xi32>
    %c0_i32_25 = arith.constant 0 : i32
    %53 = vector.broadcast %c0_i32_25 : i32 to vector<32x1xi32>
    %54 = arith.cmpi ne, %52, %53 : vector<32x1xi32>
    %c7_i32 = arith.constant 7 : i32
    %55 = vector.broadcast %c7_i32 : i32 to vector<32x1xi32>
    %56 = arith.cmpi ne, %52, %55 : vector<32x1xi32>
    %57 = vector.extract_strided_slice %35 {offsets = [0, 0], sizes = [32, 8], strides = [1, 1]} : vector<50x8xf32> to vector<32x8xf32>
    %cst_26 = arith.constant 0.000000e+00 : f32
    %58 = vector.shape_cast %54 : vector<32x1xi1> to vector<32x1xi1>
    %59 = vector.broadcast %58 : vector<32x1xi1> to vector<32x8xi1>
    %60 = vector.broadcast %cst_26 : f32 to vector<32x8xf32>
    %61 = arith.select %59, %57, %60 : vector<32x8xi1>, vector<32x8xf32>
    %62 = vector.extract_strided_slice %35 {offsets = [1, 0], sizes = [32, 8], strides = [1, 1]} : vector<50x8xf32> to vector<32x8xf32>
    %63 = vector.extract_strided_slice %35 {offsets = [2, 0], sizes = [32, 8], strides = [1, 1]} : vector<50x8xf32> to vector<32x8xf32>
    %cst_27 = arith.constant 0.000000e+00 : f32
    %64 = vector.shape_cast %56 : vector<32x1xi1> to vector<32x1xi1>
    %65 = vector.broadcast %64 : vector<32x1xi1> to vector<32x8xi1>
    %66 = vector.broadcast %cst_27 : f32 to vector<32x8xf32>
    %67 = arith.select %65, %63, %66 : vector<32x8xi1>, vector<32x8xf32>
    %68 = vector.extract_strided_slice %35 {offsets = [8, 0], sizes = [32, 8], strides = [1, 1]} : vector<50x8xf32> to vector<32x8xf32>
    %cst_28 = arith.constant 0.000000e+00 : f32
    %69 = vector.shape_cast %54 : vector<32x1xi1> to vector<32x1xi1>
    %70 = vector.broadcast %69 : vector<32x1xi1> to vector<32x8xi1>
    %71 = vector.broadcast %cst_28 : f32 to vector<32x8xf32>
    %72 = arith.select %70, %68, %71 : vector<32x8xi1>, vector<32x8xf32>
    %73 = vector.extract_strided_slice %35 {offsets = [9, 0], sizes = [32, 8], strides = [1, 1]} : vector<50x8xf32> to vector<32x8xf32>
    %74 = vector.extract_strided_slice %35 {offsets = [10, 0], sizes = [32, 8], strides = [1, 1]} : vector<50x8xf32> to vector<32x8xf32>
    %cst_29 = arith.constant 0.000000e+00 : f32
    %75 = vector.shape_cast %56 : vector<32x1xi1> to vector<32x1xi1>
    %76 = vector.broadcast %75 : vector<32x1xi1> to vector<32x8xi1>
    %77 = vector.broadcast %cst_29 : f32 to vector<32x8xf32>
    %78 = arith.select %76, %74, %77 : vector<32x8xi1>, vector<32x8xf32>
    %79 = vector.extract_strided_slice %35 {offsets = [16, 0], sizes = [32, 8], strides = [1, 1]} : vector<50x8xf32> to vector<32x8xf32>
    %cst_30 = arith.constant 0.000000e+00 : f32
    %80 = vector.shape_cast %54 : vector<32x1xi1> to vector<32x1xi1>
    %81 = vector.broadcast %80 : vector<32x1xi1> to vector<32x8xi1>
    %82 = vector.broadcast %cst_30 : f32 to vector<32x8xf32>
    %83 = arith.select %81, %79, %82 : vector<32x8xi1>, vector<32x8xf32>
    %84 = vector.extract_strided_slice %35 {offsets = [17, 0], sizes = [32, 8], strides = [1, 1]} : vector<50x8xf32> to vector<32x8xf32>
    %85 = vector.extract_strided_slice %35 {offsets = [18, 0], sizes = [32, 8], strides = [1, 1]} : vector<50x8xf32> to vector<32x8xf32>
    %cst_31 = arith.constant 0.000000e+00 : f32
    %86 = vector.shape_cast %56 : vector<32x1xi1> to vector<32x1xi1>
    %87 = vector.broadcast %86 : vector<32x1xi1> to vector<32x8xi1>
    %88 = vector.broadcast %cst_31 : f32 to vector<32x8xf32>
    %89 = arith.select %87, %85, %88 : vector<32x8xi1>, vector<32x8xf32>
    %90 = tpu.concatenate %61, %62, %67, %72, %73, %78, %83, %84, %89 in 1 : vector<32x8xf32>, vector<32x8xf32>, vector<32x8xf32>, vector<32x8xf32>, vector<32x8xf32>, vector<32x8xf32>, vector<32x8xf32>, vector<32x8xf32>, vector<32x8xf32> -> vector<32x72xf32>
    %c0_32 = arith.constant 0 : index
    %c0_33 = arith.constant 0 : index
    %91 = vector.load %arg7[%c0_32, %c0_33] : memref<72x16xf32, #tpu.memory_space<vmem>>, vector<72x16xf32>
    %cst_34 = arith.constant dense<0.000000e+00> : vector<32x16xf32>
    %92 = tpu.matmul %90, %91, %cst_34 {dimension_numbers = #tpu.dot_dimension_numbers<[1], [0], [0], [1], [0, 0, 1, 1], [], []>} : vector<32x72xf32>, vector<72x16xf32>, vector<32x16xf32> -> vector<32x16xf32>
    %c0_35 = arith.constant 0 : index
    %c0_36 = arith.constant 0 : index
    %93 = vector.load %arg8[%c0_35, %c0_36] : memref<1x16xf32, #tpu.memory_space<vmem>>, vector<1x16xf32>
    %94 = vector.broadcast %93 : vector<1x16xf32> to vector<32x16xf32>
    %95 = arith.addf %92, %94 : vector<32x16xf32>
    %cst_37 = arith.constant 0.000000e+00 : f32
    %96 = vector.broadcast %cst_37 : f32 to vector<32x16xf32>
    %97 = arith.cmpf ogt, %95, %96 : vector<32x16xf32>
    %cst_38 = arith.constant 0.00999999977 : f32
    %98 = vector.broadcast %cst_38 : f32 to vector<32x16xf32>
    %99 = arith.mulf %98, %95 : vector<32x16xf32>
    %100 = arith.select %97, %95, %99 : vector<32x16xi1>, vector<32x16xf32>
    %101 = vector.shape_cast %1 : vector<4x8x16xf32> to vector<32x16xf32>
    %102 = arith.addf %100, %101 : vector<32x16xf32>
    %103 = vector.shape_cast %102 : vector<32x16xf32> to vector<4x8x16xf32>
    %c0_39 = arith.constant 0 : index
    %c0_40 = arith.constant 0 : index
    %c0_41 = arith.constant 0 : index
    %c0_42 = arith.constant 0 : index
    %104 = vector.load %arg9[%c0_39, %c0_40, %c0_41, %c0_42] : memref<1x4x8x16xf32, #tpu.memory_space<vmem>>, vector<1x4x8x16xf32>
    %105 = vector.shape_cast %104 : vector<1x4x8x16xf32> to vector<4x8x16xf32>
    %106 = vector.shape_cast %103 : vector<4x8x16xf32> to vector<1x4x8x16xf32>
    tpu.vector_store %arg9[%c0_39, %c0_40, %c0_41, %c0_42], %106 {strides = array<i32>} : memref<1x4x8x16xf32, #tpu.memory_space<vmem>>, vector<1x4x8x16xf32>,
    return
  }
  func.func @transform_0(%arg0: i32, %arg1: i32) -> (i32, i32, i32, i32) {
    %c0_i32 = arith.constant 0 : i32
    %c0_i32_0 = arith.constant 0 : i32
    %c0_i32_1 = arith.constant 0 : i32
    return %arg0, %arg1, %c0_i32, %c0_i32_0 : i32, i32, i32, i32
  }
  func.func @transform_1(%arg0: i32, %arg1: i32) -> (i32, i32, i32, i32) {
    %c4_i32 = arith.constant 4 : i32
    %0 = arith.muli %arg1, %c4_i32 : i32
    %c1_i32 = arith.constant 1 : i32
    %1 = arith.subi %0, %c1_i32 : i32
    %c0_i32 = arith.constant 0 : i32
    %2 = arith.maxsi %1, %c0_i32 : i32
    %c0_i32_0 = arith.constant 0 : i32
    %c0_i32_1 = arith.constant 0 : i32
    %c0_i32_2 = arith.constant 0 : i32
    return %arg0, %2, %c0_i32_0, %c0_i32_1 : i32, i32, i32, i32
  }
  func.func @transform_2(%arg0: i32, %arg1: i32) -> (i32, i32, i32, i32) {
    %c1_i32 = arith.constant 1 : i32
    %0 = arith.addi %arg1, %c1_i32 : i32
    %c4_i32 = arith.constant 4 : i32
    %1 = arith.muli %0, %c4_i32 : i32
    %c7_i32 = arith.constant 7 : i32
    %2 = arith.minsi %1, %c7_i32 : i32
    %c0_i32 = arith.constant 0 : i32
    %c0_i32_0 = arith.constant 0 : i32
    %c0_i32_1 = arith.constant 0 : i32
    return %arg0, %2, %c0_i32, %c0_i32_0 : i32, i32, i32, i32
  }
  func.func @transform_3(%arg0: i32, %arg1: i32) -> (i32, i32) {
    %c0_i32 = arith.constant 0 : i32
    %c0_i32_0 = arith.constant 0 : i32
    %c0_i32_1 = arith.constant 0 : i32
    return %c0_i32, %c0_i32_0 : i32, i32
  }
  func.func @transform_4(%arg0: i32, %arg1: i32) -> (i32, i32) {
    %c0_i32 = arith.constant 0 : i32
    %c0_i32_0 = arith.constant 0 : i32
    %c0_i32_1 = arith.constant 0 : i32
    return %c0_i32, %c0_i32_0 : i32, i32
  }
  func.func @transform_5(%arg0: i32, %arg1: i32) -> (i32, i32) {
    %c0_i32 = arith.constant 0 : i32
    %c0_i32_0 = arith.constant 0 : i32
    %c0_i32_1 = arith.constant 0 : i32
    return %c0_i32, %c0_i32_0 : i32, i32
  }
  func.func @transform_6(%arg0: i32, %arg1: i32) -> (i32, i32) {
    %c0_i32 = arith.constant 0 : i32
    %c0_i32_0 = arith.constant 0 : i32
    %c0_i32_1 = arith.constant 0 : i32
    return %c0_i32, %c0_i32_0 : i32, i32
  }
  func.func @transform_7(%arg0: i32, %arg1: i32) -> (i32, i32, i32, i32) {
    %c0_i32 = arith.constant 0 : i32
    %c0_i32_0 = arith.constant 0 : i32
    %c0_i32_1 = arith.constant 0 : i32
    return %arg0, %arg1, %c0_i32, %c0_i32_0 : i32, i32, i32, i32
  }
}

</mosaic_0001>

<llo_original>
// kernel: tpu_custom_call.1
$region0: #{tpu_custom_call.1}
  #allocation0 [shape = 'u32[]', space=smem, size = 0x4, offset = 0x4, fixed_abs, tag = 'smem constant byte address 0x4 - core index']
  #allocation1 [shape = 'u32[72,128]{1,0:T(1,128)}', space=vmem, size = 0x9000, scoped, tag = 'internal scratch']
  %s0 = inlined_call_operand.hbm [shape: f32[2,8,8,16], index: 0, kind: input, shape index: {}]
  %s1 = inlined_call_operand.hbm [shape: f32[2,8,8,16], index: 1, kind: input, shape index: {}]
  %s2 = inlined_call_operand.hbm [shape: f32[2,8,8,16], index: 2, kind: input, shape index: {}]
  %s3 = inlined_call_operand.vmem [shape: f32[16,8], index: 3, kind: input, shape index: {}]
  %s4 = inlined_call_operand.vmem [shape: f32[1,8], index: 4, kind: input, shape index: {}]
  %s5 = inlined_call_operand.vmem [shape: f32[72,16], index: 5, kind: input, shape index: {}]
  %s6 = inlined_call_operand.vmem [shape: f32[1,16], index: 6, kind: input, shape index: {}]
  %s7 = inlined_call_operand.hbm [shape: f32[2,8,8,16], index: 7, kind: output, shape index: {}]
  %s8 = sld [smem:[#allocation0]]
  $region73: #{tpu_custom_call.1} parent=0
    _
  %s10 = ssub.s32 1, %s8
  %s11 = scalar_select 0, %s10, %s8
  $region1: #{tpu_custom_call.1} parent=0
    #allocation2 [shape = 'u8[32768]{0}', space=vmem, size = 0x8000, scoped, tag = 'input window, operand 0']
    #allocation3 [shape = 's32[2]{0}', space=sflag, size = 0x8, scoped, tag = 'scoped memory for tpu_custom_call.1']
    #allocation4 [shape = 's32[2]{0}', space=sflag, size = 0x8, scoped, tag = 'scoped memory for tpu_custom_call.1']
    #allocation5 [shape = 'u8[8192]{0}', space=vmem, size = 0x2000, scoped, tag = 'input window, operand 1']
    #allocation6 [shape = 's32[2]{0}', space=sflag, size = 0x8, scoped, tag = 'scoped memory for tpu_custom_call.1']
    #allocation7 [shape = 'u8[8192]{0}', space=vmem, size = 0x2000, scoped, tag = 'input window, operand 2']
    #allocation8 [shape = 'u8[32768]{0}', space=vmem, size = 0x8000, scoped, tag = 'output window, operand 0']
    %12 = vsyncpa [#allocation3], 0
    %s13 = scalar_lea.sflag [#allocation3], 1
    %14 = vsyncpa %s13, 0
    %15 = vsyncpa [#allocation6], 0
    %s16 = scalar_lea.sflag [#allocation6], 1
    %17 = vsyncpa %s16, 0
    %18 = vsyncpa [#allocation4], 0
    %s19 = scalar_lea.sflag [#allocation4], 1
    %20 = vsyncpa %s19, 0
    loop: start=0, step=1, limit=6
    $region2: #{tpu_custom_call.1} parent=1 // loop_pre_header
      _
    $region3: #{tpu_custom_call.1} parent=1 // loop_header
      %s22 = sphi 0, %s26
      %p23 = scmp.ge.s32.totalorder %s22, 6
      %s29 = sphi 0, %s41
      %s30 = sphi 0, %s37
      %s31 = sphi 0, %s29
      %s32 = sphi 0, %s30
      %s33 = sphi 0, %s31
      %s34 = sphi 0, %s32
      %s46 = sphi 0, %s48
      %s49 = sphi 0, %s46
      %s50 = sphi 0, %s49
      %s66 = sphi 0, %s50
      %s82 = sphi 0, %s84
      %s85 = sphi 0, %s82
      %s86 = sphi 0, %s85
      %s102 = sphi 0, %s86
      %s118 = sphi 0, %s120
      %s121 = sphi 0, %s118
      %s122 = sphi 0, %s121
      %s138 = sphi 0, %s122
      %s142 = sphi 0, %s142
      %s144 = sphi 0, %s142
      %s145 = sphi 0, %s144
      %s159 = sphi 0, %s145
      %s163 = sphi 0, %s163
      %s165 = sphi 0, %s163
      %s166 = sphi 0, %s165
      %s180 = sphi 0, %s166
      %s184 = sphi 0, %s184
      %s186 = sphi 0, %s184
      %s187 = sphi 0, %s186
      %s201 = sphi 0, %s187
      %s205 = sphi 0, %s205
      %s207 = sphi 0, %s205
      %s208 = sphi 0, %s207
      %s222 = sphi 0, %s208
      %s230 = sphi 0, %s232
      %s233 = sphi 0, %s230
      %s234 = sphi 0, %s233
      %s250 = sphi 0, %s234
    $region4: #{tpu_custom_call.1} parent=1 // loop_header_branch
      %25 = sbr.rel (%p23) target = $region8
    $region5: #{tpu_custom_call.1} parent=1 // loop_body
      %s27 = ssub.s32 %s22, 1
      %s28 = ssub.s32 %s22, 2
      %s35 = sadd.s32 1, %s30
      %p36 = scmp.ge.s32.totalorder %s35, 2
      %s37 = scalar_select %p36, 0, %s35
      %s38 = sadd.s32 1, %s29
      %s39 = scalar_select %p36, %s38, %s29
      %p40 = scmp.ge.s32.totalorder %s39, 2
      %s41 = scalar_select %p40, 0, %s39
      %s42 = ssub.s32 %s29, %s41
      %s43 = ssub.s32 %s30, %s37
      %s44 = sor.u32 %s42, %s43
      %p45 = scmp.eq.s32.totalorder %s44, 0
      %s47 = sadd.s32 %s46, 1
      %s48 = scalar_select %p45, %s46, %s47
      %p51 = pneg %p45
      %p52 = scmp.eq.s32.totalorder %s22, 3
      %p53 = por %p51, %p52
      %p54 = scmp.ne.s32.totalorder %s46, %s49
      %p55 = scmp.eq.s32.totalorder %s22, 0
      %p56 = por %p54, %p55
      %p57 = scmp.ne.s32.totalorder %s46, %s49
      %p58 = scmp.eq.s32.totalorder %s27, 3
      %p59 = por %p57, %p58
      %p60 = scmp.ne.s32.totalorder %s49, %s50
      %p61 = scmp.eq.s32.totalorder %s27, 0
      %p62 = por %p60, %p61
      %p63 = scmp.ne.s32.totalorder %s49, %s50
      %p64 = scmp.eq.s32.totalorder %s28, 3
      %p65 = por %p63, %p64
      %p67 = scmp.ne.s32.totalorder %s50, %s66
      %p68 = scmp.eq.s32.totalorder %s28, 0
      %p69 = por %p67, %p68
      %s70 = smul.u32 %s30, 4
      %s71 = ssub.s32 %s70, 1
      %p72 = scmp.gt.s32.totalorder %s71, 0
      %s73 = scalar_select %p72, %s71, 0
      %s74 = smul.u32 %s37, 4
      %s75 = ssub.s32 %s74, 1
      %p76 = scmp.gt.s32.totalorder %s75, 0
      %s77 = scalar_select %p76, %s75, 0
      %s78 = ssub.s32 %s29, %s41
      %s79 = ssub.s32 %s73, %s77
      %s80 = sor.u32 %s78, %s79
      %p81 = scmp.eq.s32.totalorder %s80, 0
      %s83 = sadd.s32 %s82, 1
      %s84 = scalar_select %p81, %s82, %s83
      %p87 = pneg %p81
      %p88 = scmp.eq.s32.totalorder %s22, 3
      %p89 = por %p87, %p88
      %p90 = scmp.ne.s32.totalorder %s82, %s85
      %p91 = scmp.eq.s32.totalorder %s22, 0
      %p92 = por %p90, %p91
      %p93 = scmp.ne.s32.totalorder %s82, %s85
      %p94 = scmp.eq.s32.totalorder %s27, 3
      %p95 = por %p93, %p94
      %p96 = scmp.ne.s32.totalorder %s85, %s86
      %p97 = scmp.eq.s32.totalorder %s27, 0
      %p98 = por %p96, %p97
      %p99 = scmp.ne.s32.totalorder %s85, %s86
      %p100 = scmp.eq.s32.totalorder %s28, 3
      %p101 = por %p99, %p100
      %p103 = scmp.ne.s32.totalorder %s86, %s102
      %p104 = scmp.eq.s32.totalorder %s28, 0
      %p105 = por %p103, %p104
      %s106 = sadd.s32 %s30, 1
      %s107 = smul.u32 %s106, 4
      %p108 = scmp.lt.s32.totalorder %s107, 7
      %s109 = scalar_select %p108, %s107, 7
      %s110 = sadd.s32 %s37, 1
      %s111 = smul.u32 %s110, 4
      %p112 = scmp.lt.s32.totalorder %s111, 7
      %s113 = scalar_select %p112, %s111, 7
      %s114 = ssub.s32 %s29, %s41
      %s115 = ssub.s32 %s109, %s113
      %s116 = sor.u32 %s114, %s115
      %p117 = scmp.eq.s32.totalorder %s116, 0
      %s119 = sadd.s32 %s118, 1
      %s120 = scalar_select %p117, %s118, %s119
      %p123 = pneg %p117
      %p124 = scmp.eq.s32.totalorder %s22, 3
      %p125 = por %p123, %p124
      %p126 = scmp.ne.s32.totalorder %s118, %s121
      %p127 = scmp.eq.s32.totalorder %s22, 0
      %p128 = por %p126, %p127
      %p129 = scmp.ne.s32.totalorder %s118, %s121
      %p130 = scmp.eq.s32.totalorder %s27, 3
      %p131 = por %p129, %p130
      %p132 = scmp.ne.s32.totalorder %s121, %s122
      %p133 = scmp.eq.s32.totalorder %s27, 0
      %p134 = por %p132, %p133
      %p135 = scmp.ne.s32.totalorder %s121, %s122
      %p136 = scmp.eq.s32.totalorder %s28, 3
      %p137 = por %p135, %p136
      %p139 = scmp.ne.s32.totalorder %s122, %s138
      %p140 = scmp.eq.s32.totalorder %s28, 0
      %p141 = por %p139, %p140
      %s143 = sadd.s32 %s142, 1
      %p146 = scmp.eq.s32.totalorder %s22, 3
      %p147 = scmp.ne.s32.totalorder %s142, %s144
      %p148 = scmp.eq.s32.totalorder %s22, 0
      %p149 = por %p147, %p148
      %p150 = scmp.ne.s32.totalorder %s142, %s144
      %p151 = scmp.eq.s32.totalorder %s27, 3
      %p152 = por %p150, %p151
      %p153 = scmp.ne.s32.totalorder %s144, %s145
      %p154 = scmp.eq.s32.totalorder %s27, 0
      %p155 = por %p153, %p154
      %p156 = scmp.ne.s32.totalorder %s144, %s145
      %p157 = scmp.eq.s32.totalorder %s28, 3
      %p158 = por %p156, %p157
      %p160 = scmp.ne.s32.totalorder %s145, %s159
      %p161 = scmp.eq.s32.totalorder %s28, 0
      %p162 = por %p160, %p161
      %s164 = sadd.s32 %s163, 1
      %p167 = scmp.eq.s32.totalorder %s22, 3
      %p168 = scmp.ne.s32.totalorder %s163, %s165
      %p169 = scmp.eq.s32.totalorder %s22, 0
      %p170 = por %p168, %p169
      %p171 = scmp.ne.s32.totalorder %s163, %s165
      %p172 = scmp.eq.s32.totalorder %s27, 3
      %p173 = por %p171, %p172
      %p174 = scmp.ne.s32.totalorder %s165, %s166
      %p175 = scmp.eq.s32.totalorder %s27, 0
      %p176 = por %p174, %p175
      %p177 = scmp.ne.s32.totalorder %s165, %s166
      %p178 = scmp.eq.s32.totalorder %s28, 3
      %p179 = por %p177, %p178
      %p181 = scmp.ne.s32.totalorder %s166, %s180
      %p182 = scmp.eq.s32.totalorder %s28, 0
      %p183 = por %p181, %p182
      %s185 = sadd.s32 %s184, 1
      %p188 = scmp.eq.s32.totalorder %s22, 3
      %p189 = scmp.ne.s32.totalorder %s184, %s186
      %p190 = scmp.eq.s32.totalorder %s22, 0
      %p191 = por %p189, %p190
      %p192 = scmp.ne.s32.totalorder %s184, %s186
      %p193 = scmp.eq.s32.totalorder %s27, 3
      %p194 = por %p192, %p193
      %p195 = scmp.ne.s32.totalorder %s186, %s187
      %p196 = scmp.eq.s32.totalorder %s27, 0
      %p197 = por %p195, %p196
      %p198 = scmp.ne.s32.totalorder %s186, %s187
      %p199 = scmp.eq.s32.totalorder %s28, 3
      %p200 = por %p198, %p199
      %p202 = scmp.ne.s32.totalorder %s187, %s201
      %p203 = scmp.eq.s32.totalorder %s28, 0
      %p204 = por %p202, %p203
      %s206 = sadd.s32 %s205, 1
      %p209 = scmp.eq.s32.totalorder %s22, 3
      %p210 = scmp.ne.s32.totalorder %s205, %s207
      %p211 = scmp.eq.s32.totalorder %s22, 0
      %p212 = por %p210, %p211
      %p213 = scmp.ne.s32.totalorder %s205, %s207
      %p214 = scmp.eq.s32.totalorder %s27, 3
      %p215 = por %p213, %p214
      %p216 = scmp.ne.s32.totalorder %s207, %s208
      %p217 = scmp.eq.s32.totalorder %s27, 0
      %p218 = por %p216, %p217
      %p219 = scmp.ne.s32.totalorder %s207, %s208
      %p220 = scmp.eq.s32.totalorder %s28, 3
      %p221 = por %p219, %p220
      %p223 = scmp.ne.s32.totalorder %s208, %s222
      %p224 = scmp.eq.s32.totalorder %s28, 0
      %p225 = por %p223, %p224
      %s226 = ssub.s32 %s29, %s41
      %s227 = ssub.s32 %s30, %s37
      %s228 = sor.u32 %s226, %s227
      %p229 = scmp.eq.s32.totalorder %s228, 0
      %s231 = sadd.s32 %s230, 1
      %s232 = scalar_select %p229, %s230, %s231
      %p235 = pneg %p229
      %p236 = scmp.eq.s32.totalorder %s22, 3
      %p237 = por %p235, %p236
      %p238 = scmp.ne.s32.totalorder %s230, %s233
      %p239 = scmp.eq.s32.totalorder %s22, 0
      %p240 = por %p238, %p239
      %p241 = scmp.ne.s32.totalorder %s230, %s233
      %p242 = scmp.eq.s32.totalorder %s27, 3
      %p243 = por %p241, %p242
      %p244 = scmp.ne.s32.totalorder %s233, %s234
      %p245 = scmp.eq.s32.totalorder %s27, 0
      %p246 = por %p244, %p245
      %p247 = scmp.ne.s32.totalorder %s233, %s234
      %p248 = scmp.eq.s32.totalorder %s28, 3
      %p249 = por %p247, %p248
      %p251 = scmp.ne.s32.totalorder %s234, %s250
      %p252 = scmp.eq.s32.totalorder %s28, 0
      %p253 = por %p251, %p252
      %p254 = scmp.le.s32.totalorder 1, %s22
      %p255 = scmp.lt.s32.totalorder %s22, 5
      %p256 = pnand %p254, %p255
      %p257 = pneg %p256
      // Predicated region
      $region9: #{tpu_custom_call.1} parent=5 // pred_check
        _
      $region10: #{tpu_custom_call.1} parent=5 // pred_check_branch
        %259 = sbr.rel (%p256) target = $region12
      $region11: #{tpu_custom_call.1} parent=5 // pred_region
        %s260 = ssub.s32 %s22, 1
        // Predicated region
        $region13: #{tpu_custom_call.1} parent=11 // pred_check
          %p261 = pneg %p155
        $region14: #{tpu_custom_call.1} parent=11 // pred_check_branch
          %263 = sbr.rel (%p261) target = $region16
        $region15: #{tpu_custom_call.1} parent=11 // pred_region
          _
        $region16: #{tpu_custom_call.1} parent=11 // pred_fallthru
          _
        // Predicated region
        $region17: #{tpu_custom_call.1} parent=11 // pred_check
          %p264 = pneg %p176
        $region18: #{tpu_custom_call.1} parent=11 // pred_check_branch
          %266 = sbr.rel (%p264) target = $region20
        $region19: #{tpu_custom_call.1} parent=11 // pred_region
          _
        $region20: #{tpu_custom_call.1} parent=11 // pred_fallthru
          _
        // Predicated region
        $region21: #{tpu_custom_call.1} parent=11 // pred_check
          %p267 = pneg %p197
        $region22: #{tpu_custom_call.1} parent=11 // pred_check_branch
          %269 = sbr.rel (%p267) target = $region24
        $region23: #{tpu_custom_call.1} parent=11 // pred_region
          _
        $region24: #{tpu_custom_call.1} parent=11 // pred_fallthru
          _
        // Predicated region
        $region25: #{tpu_custom_call.1} parent=11 // pred_check
          %p270 = pneg %p218
        $region26: #{tpu_custom_call.1} parent=11 // pred_check_branch
          %272 = sbr.rel (%p270) target = $region28
        $region27: #{tpu_custom_call.1} parent=11 // pred_region
          _
        $region28: #{tpu_custom_call.1} parent=11 // pred_fallthru
          _
      $region12: #{tpu_custom_call.1} parent=5 // pred_fallthru
        _
      %p273 = scmp.lt.s32.totalorder %s22, 4
      // Predicated region
      $region29: #{tpu_custom_call.1} parent=5 // pred_check
        %p274 = pneg %p273
      $region30: #{tpu_custom_call.1} parent=5 // pred_check_branch
        %276 = sbr.rel (%p274) target = $region32
      $region31: #{tpu_custom_call.1} parent=5 // pred_region
        // Predicated region
        $region33: #{tpu_custom_call.1} parent=31 // pred_check
          %p277 = pneg %p56
        $region34: #{tpu_custom_call.1} parent=31 // pred_check_branch
          %279 = sbr.rel (%p277) target = $region36
        $region35: #{tpu_custom_call.1} parent=31 // pred_region
          %s280 = sand.u32 %s46, 1
          %s281 = scalar_lea.sflag [#allocation3], %s280
          %s282 = sand.u32 %s46, 1
          %s283 = smul.addr %s282, 32
          %s284 = scalar_lea.vmem [#allocation2], %s283
          %s285 = smul.u32 4, %s30
          %287 = vsyncadd %s281, 0
          %s288 = smul.addr %s29, 8
          %s289 = sadd.s32 %s285, %s288
          %s290 = smul.addr %s289, 8
          %s291 = scalar_lea.hbm %s0, %s290
          %s292 = sshll.u32 %s291, 4
          %s293 = int_to_ptr.hbm [resolvable:$true] %s292
          %s294 = sshll.u32 %s284, 4
          %s295 = int_to_ptr.vmem [resolvable:$true] %s294
          %300 = dma.hbm_to_vmem [thread:$0]  %s293, 512, %s295, %s281, 128, 128, 8
        $region36: #{tpu_custom_call.1} parent=31 // pred_fallthru
          _
        // Predicated region
        $region37: #{tpu_custom_call.1} parent=31 // pred_check
          %p301 = pneg %p92
        $region38: #{tpu_custom_call.1} parent=31 // pred_check_branch
          %303 = sbr.rel (%p301) target = $region40
        $region39: #{tpu_custom_call.1} parent=31 // pred_region
          %s304 = sand.u32 %s22, 1
          %s305 = scalar_lea.sflag [#allocation6], %s304
          %s306 = sand.u32 %s82, 1
          %s307 = smul.addr %s306, 8
          %s308 = scalar_lea.vmem [#allocation5], %s307
          %s309 = smul.u32 %s30, 4
          %s310 = ssub.s32 %s309, 1
          %p311 = scmp.gt.s32.totalorder %s310, 0
          %s312 = scalar_select %p311, %s310, 0
          %314 = vsyncadd %s305, 0
          %s315 = smul.addr %s29, 8
          %s316 = sadd.s32 %s312, %s315
          %s317 = smul.addr %s316, 8
          %s318 = scalar_lea.hbm %s1, %s317
          %s320 = sshll.u32 %s318, 4
          %s321 = int_to_ptr.hbm [resolvable:$true] %s320
          %s322 = sshll.u32 %s308, 4
          %s323 = int_to_ptr.vmem [resolvable:$true] %s322
          %325 = dma.hbm_to_vmem [thread:$0]  %s321, 128, %s323, %s305
        $region40: #{tpu_custom_call.1} parent=31 // pred_fallthru
          _
        // Predicated region
        $region41: #{tpu_custom_call.1} parent=31 // pred_check
          %p326 = pneg %p128
        $region42: #{tpu_custom_call.1} parent=31 // pred_check_branch
          %328 = sbr.rel (%p326) target = $region44
        $region43: #{tpu_custom_call.1} parent=31 // pred_region
          %s329 = sand.u32 %s22, 1
          %s330 = scalar_lea.sflag [#allocation6], %s329
          %s331 = sand.u32 %s118, 1
          %s332 = smul.addr %s331, 8
          %s333 = scalar_lea.vmem [#allocation7], %s332
          %s334 = sadd.s32 %s30, 1
          %s335 = smul.u32 %s334, 4
          %p336 = scmp.lt.s32.totalorder %s335, 7
          %s337 = scalar_select %p336, %s335, 7
          %339 = vsyncadd %s330, 0
          %s340 = smul.addr %s29, 8
          %s341 = sadd.s32 %s337, %s340
          %s342 = smul.addr %s341, 8
          %s343 = scalar_lea.hbm %s2, %s342
          %s345 = sshll.u32 %s343, 4
          %s346 = int_to_ptr.hbm [resolvable:$true] %s345
          %s347 = sshll.u32 %s333, 4
          %s348 = int_to_ptr.vmem [resolvable:$true] %s347
          %350 = dma.hbm_to_vmem [thread:$0]  %s346, 128, %s348, %s330
        $region44: #{tpu_custom_call.1} parent=31 // pred_fallthru
          _
      $region32: #{tpu_custom_call.1} parent=5 // pred_fallthru
        _
      %p351 = scmp.le.s32.totalorder 1, %s22
      %p352 = scmp.lt.s32.totalorder %s22, 5
      %p353 = pnand %p351, %p352
      %p354 = pneg %p353
      // Predicated region
      $region45: #{tpu_custom_call.1} parent=5 // pred_check
        _
      $region46: #{tpu_custom_call.1} parent=5 // pred_check_branch
        %356 = sbr.rel (%p353) target = $region48
      $region47: #{tpu_custom_call.1} parent=5 // pred_region
        %s357 = ssub.s32 %s22, 1
        %s358 = sand.u32 %s49, 1
        %s359 = scalar_lea.sflag [#allocation3], %s358
        %s360 = sand.u32 %s49, 1
        %s361 = smul.addr %s360, 32
        %s362 = scalar_lea.vmem [#allocation2], %s361
        // Predicated region
        $region49: #{tpu_custom_call.1} parent=47 // pred_check
          %p363 = pneg %p62
        $region50: #{tpu_custom_call.1} parent=47 // pred_check_branch
          %365 = sbr.rel (%p363) target = $region52
        $region51: #{tpu_custom_call.1} parent=47 // pred_region
          %367 = dma.done %s359, 512
        $region52: #{tpu_custom_call.1} parent=47 // pred_fallthru
          _
        %s368 = sand.u32 %s27, 1
        %s369 = scalar_lea.sflag [#allocation6], %s368
        %s370 = sand.u32 %s85, 1
        %s371 = smul.addr %s370, 8
        %s372 = scalar_lea.vmem [#allocation5], %s371
        // Predicated region
        $region53: #{tpu_custom_call.1} parent=47 // pred_check
          %p373 = pneg %p98
        $region54: #{tpu_custom_call.1} parent=47 // pred_check_branch
          %375 = sbr.rel (%p373) target = $region56
        $region55: #{tpu_custom_call.1} parent=47 // pred_region
          %377 = dma.done %s369, 128
        $region56: #{tpu_custom_call.1} parent=47 // pred_fallthru
          _
        %s378 = sand.u32 %s27, 1
        %s379 = scalar_lea.sflag [#allocation6], %s378
        %s380 = sand.u32 %s121, 1
        %s381 = smul.addr %s380, 8
        %s382 = scalar_lea.vmem [#allocation7], %s381
        // Predicated region
        $region57: #{tpu_custom_call.1} parent=47 // pred_check
          %p383 = pneg %p134
        $region58: #{tpu_custom_call.1} parent=47 // pred_check_branch
          %385 = sbr.rel (%p383) target = $region60
        $region59: #{tpu_custom_call.1} parent=47 // pred_region
          %387 = dma.done %s379, 128
        $region60: #{tpu_custom_call.1} parent=47 // pred_fallthru
          _
        %s388 = sand.u32 %s49, 1
        %s389 = scalar_lea.sflag [#allocation3], %s388
        %s390 = sand.u32 %s49, 1
        %s391 = smul.addr %s390, 32
        %s392 = scalar_lea.vmem [#allocation2], %s391
        %p393 = pneg %p62
        %p394 = pneg %p59
        %s395 = sand.u32 %s27, 1
        %s396 = scalar_lea.sflag [#allocation6], %s395
        %s397 = sand.u32 %s85, 1
        %s398 = smul.addr %s397, 8
        %s399 = scalar_lea.vmem [#allocation5], %s398
        %p400 = pneg %p98
        %p401 = pneg %p95
        %s402 = sand.u32 %s27, 1
        %s403 = scalar_lea.sflag [#allocation6], %s402
        %s404 = sand.u32 %s121, 1
        %s405 = smul.addr %s404, 8
        %s406 = scalar_lea.vmem [#allocation7], %s405
        %p407 = pneg %p134
        %p408 = pneg %p131
        %p409 = pneg %p155
        %p410 = pneg %p152
        %p411 = pneg %p176
        %p412 = pneg %p173
        %p413 = pneg %p197
        %p414 = pneg %p194
        %p415 = pneg %p218
        %p416 = pneg %p215
        %p417 = pneg %p246
        %p418 = pneg %p243
        %s419 = sand.u32 %s233, 1
        %s420 = scalar_lea.sflag [#allocation4], %s419
        %s421 = sand.u32 %s233, 1
        %s422 = smul.addr %s421, 32
        %s423 = scalar_lea.vmem [#allocation8], %s422
        %s424 = smul.u32 4, %s32
        %s425 = smul.u32 %s32, 4
        %s426 = ssub.s32 %s425, 1
        %p427 = scmp.gt.s32.totalorder %s426, 0
        %s428 = scalar_select %p427, %s426, 0
        %s429 = sadd.s32 %s32, 1
        %s430 = smul.u32 %s429, 4
        %p431 = scmp.lt.s32.totalorder %s430, 7
        %s432 = scalar_select %p431, %s430, 7
        %s433 = smul.u32 4, %s32
        %v434 = vld [vmem:[%s362] sm:$0xff]
        %v435 = vld [vmem:[%s362 + $0x8] sm:$0xff]
        %v436 = vld [vmem:[%s362 + $0x10] sm:$0xff]
        %v437 = vld [vmem:[%s362 + $0x18] sm:$0xff]
        %v438 = vld [vmem:[%s372] sm:$0xff]
        %v439 = vld [vmem:[%s382] sm:$0xff]
        %v440 = vld [vmem:[%s3] sm:$0xff]
        %v441 = vld [vmem:[%s3 + $0x8] sm:$0xff]
        %v442 = vld [vmem:[%s4] sm:$0x1]
        %v444 = vperm.slane %v442, 0
        %vm446 = vcmask 130048
        %v448 = vsel %vm446, %v438, 0
        %v451 = vsel %vm446, %v434, 0
        %v454 = vsel %vm446, %v435, 0
        %v457 = vsel %vm446, %v436, 0
        %v460 = vsel %vm446, %v437, 0
        %v463 = vsel %vm446, %v439, 0
        %465 = vmatpush.msra.mxu0 0.0
        %466 = vmatpush.msra.mxu0 0.0
        %467 = vmatpush.msra.mxu0 0.0
        %468 = vmatpush.msra.mxu0 0.0
        %469 = vmatpush.msra.mxu0 0.0
        %470 = vmatpush.msra.mxu0 0.0
        %471 = vmatpush.msra.mxu0 0.0
        %472 = vmatpush.msra.mxu0 0.0
        %473 = vmatpush.msra.mxu0 0.0
        %474 = vmatpush.msra.mxu0 0.0
        %475 = vmatpush.msra.mxu0 0.0
        %476 = vmatpush.msra.mxu0 0.0
        %477 = vmatpush.msra.mxu0 0.0
        %478 = vmatpush.msra.mxu0 0.0
        %479 = vmatpush.msra.mxu0 %v441
        %480 = vmatpush.msra.mxu0 %v440
        %481 = vmatmul.f32.gmra.mxu0 %v448
        %v482 = vpop.f32.mrf.mxu0
        %v483 = vadd.f32 %v444, %v482
        %484 = vmatmul.f32.gmra.mxu0 %v451
        %v485 = vpop.f32.mrf.mxu0
        %v486 = vadd.f32 %v444, %v485
        %487 = vmatmul.f32.gmra.mxu0 %v454
        %v488 = vpop.f32.mrf.mxu0
        %v489 = vadd.f32 %v444, %v488
        %490 = vmatmul.f32.gmra.mxu0 %v457
        %v491 = vpop.f32.mrf.mxu0
        %v492 = vadd.f32 %v444, %v491
        %493 = vmatmul.f32.gmra.mxu0 %v460
        %v494 = vpop.f32.mrf.mxu0
        %v495 = vadd.f32 %v444, %v494
        %496 = vmatmul.f32.gmra.mxu0 %v463
        %v497 = vpop.f32.mrf.mxu0
        %v498 = vadd.f32 %v444, %v497
        %499 = vdwg.mxu0
        %vm500 = vcmp.gt.f32.partialorder %v483, 0.0
        %vm501 = vcmp.gt.f32.partialorder %v486, 0.0
        %vm502 = vcmp.gt.f32.partialorder %v489, 0.0
        %vm503 = vcmp.gt.f32.partialorder %v492, 0.0
        %vm504 = vcmp.gt.f32.partialorder %v495, 0.0
        %vm505 = vcmp.gt.f32.partialorder %v498, 0.0
        %v506 = vmul.f32 %v483, 0.01
        %v507 = vmul.f32 %v486, 0.01
        %v508 = vmul.f32 %v489, 0.01
        %v509 = vmul.f32 %v492, 0.01
        %v510 = vmul.f32 %v495, 0.01
        %v511 = vmul.f32 %v498, 0.01
        %v512 = vsel %vm500, %v483, %v506
        %v513 = vsel %vm501, %v486, %v507
        %v514 = vsel %vm502, %v489, %v508
        %v515 = vsel %vm503, %v492, %v509
        %v516 = vsel %vm504, %v495, %v510
        %v517 = vsel %vm505, %v498, %v511
        %v518 = vlaneseq
        %v519 = vshrl.u32 %v518, 7
        %v520 = vadd.s32 %v519, 8
        %v521 = vadd.s32 %v519, 16
        %v522 = vadd.s32 %v519, 24
        %v523 = vadd.s32 %v519, 32
        %v524 = vadd.s32 %v519, 40
        %p525 = scmp.gt.s32.totalorder %s32, 0
        %vm526 = vcmp.ge.s32.totalorder %v519, 8
        %vm527 = vcmp.ge.s32.totalorder %v520, 8
        %vm528 = vcmp.ge.s32.totalorder %v521, 8
        %vm529 = vcmp.ge.s32.totalorder %v522, 8
        %vm530 = vcmp.ge.s32.totalorder %v523, 8
        %vm531 = vcmp.ge.s32.totalorder %v524, 8
        %s532 = scalar_select %p525, 1, 0
        %v533 = vstv %s532
        %vm534 = vcmp.eq.s32.totalorder %v533, 1
        %vm535 = vmor %vm534, %vm526
        %vm536 = vmor %vm534, %vm527
        %vm537 = vmor %vm534, %vm528
        %vm538 = vmor %vm534, %vm529
        %vm539 = vmor %vm534, %vm530
        %vm540 = vmor %vm534, %vm531
        %p541 = scmp.lt.s32.totalorder %s32, 1
        %vm542 = vcmp.lt.s32.totalorder %v519, 40
        %vm543 = vcmp.lt.s32.totalorder %v520, 40
        %vm544 = vcmp.lt.s32.totalorder %v521, 40
        %vm545 = vcmp.lt.s32.totalorder %v522, 40
        %vm546 = vcmp.lt.s32.totalorder %v523, 40
        %vm547 = vcmp.lt.s32.totalorder %v524, 40
        %s548 = scalar_select %p541, 1, 0
        %v549 = vstv %s548
        %vm550 = vcmp.eq.s32.totalorder %v549, 1
        %vm551 = vmor %vm550, %vm542
        %vm552 = vmor %vm550, %vm543
        %vm553 = vmor %vm550, %vm544
        %vm554 = vmor %vm550, %vm545
        %vm555 = vmor %vm550, %vm546
        %vm556 = vmor %vm550, %vm547
        %vm557 = vmand %vm535, %vm551
        %vm558 = vmand %vm536, %vm552
        %vm559 = vmand %vm537, %vm553
        %vm560 = vmand %vm538, %vm554
        %vm561 = vmand %vm539, %vm555
        %vm562 = vmand %vm540, %vm556
        %v563 = vsel %vm557, 1, 0
        %v564 = vsel %vm558, 1, 0
        %v565 = vsel %vm559, 1, 0
        %v566 = vsel %vm560, 1, 0
        %v567 = vsel %vm561, 1, 0
        %v568 = vsel %vm562, 1, 0
        %vm569 = vcmp.eq.s32.totalorder %v563, 1
        %vm570 = vcmp.eq.s32.totalorder %v564, 1
        %vm571 = vcmp.eq.s32.totalorder %v565, 1
        %vm572 = vcmp.eq.s32.totalorder %v566, 1
        %vm573 = vcmp.eq.s32.totalorder %v567, 1
        %vm574 = vcmp.eq.s32.totalorder %v568, 1
        %v575 = vsel %vm569, %v512, 0.0
        %v576 = vsel %vm570, %v513, 0.0
        %v577 = vsel %vm571, %v514, 0.0
        %v578 = vsel %vm572, %v515, 0.0
        %v579 = vsel %vm573, %v516, 0.0
        %v580 = vsel %vm574, %v517, 0.0
        %vm587 = vcmask 1040384
        %v588 = vrot.slane %v575, 7
        %v589 = vrot.slane %v576, 7
        %v590 = vsel %vm587, %v588, %v589
        %v591 = vrot.slane %v577, 7
        %v592 = vsel %vm587, %v589, %v591
        %v593 = vrot.slane %v578, 7
        %v594 = vsel %vm587, %v591, %v593
        %v595 = vrot.slane %v579, 7
        %v596 = vsel %vm587, %v593, %v595
        %v597 = vrot.slane %v580, 7
        %v598 = vsel %vm587, %v595, %v597
        %v606 = vsel %vm587, 0.0, %v588
        %v607 = vsel %vm587, %v597, 0.0
        %vm608 = vcmp.lt.s32.totalorder %v519, 0
        %v609 = vsub.s32 0, %v519
        %v610 = vsel %vm608, %v609, %v519
        %v611 = vshrl.u32 %v610, 3
        %v612 = vand.u32 %v610, 7
        %v613 = vsub.s32 0, %v612
        %v614 = vsel %vm608, %v613, %v612
        %vm615 = vcmp.lt.s32.totalorder %v520, 0
        %v616 = vsub.s32 0, %v520
        %v617 = vsel %vm615, %v616, %v520
        %v618 = vshrl.u32 %v617, 3
        %v619 = vand.u32 %v617, 7
        %v620 = vsub.s32 0, %v619
        %v621 = vsel %vm615, %v620, %v619
        %vm622 = vcmp.lt.s32.totalorder %v521, 0
        %v623 = vsub.s32 0, %v521
        %v624 = vsel %vm622, %v623, %v521
        %v625 = vshrl.u32 %v624, 3
        %v626 = vand.u32 %v624, 7
        %v627 = vsub.s32 0, %v626
        %v628 = vsel %vm622, %v627, %v626
        %vm629 = vcmp.lt.s32.totalorder %v522, 0
        %v630 = vsub.s32 0, %v522
        %v631 = vsel %vm629, %v630, %v522
        %v632 = vshrl.u32 %v631, 3
        %v633 = vand.u32 %v631, 7
        %v634 = vsub.s32 0, %v633
        %v635 = vsel %vm629, %v634, %v633
        %vm636 = vcmp.ne.s32.totalorder %v614, 0
        %vm637 = vcmp.ne.s32.totalorder %v621, 0
        %vm638 = vcmp.ne.s32.totalorder %v628, 0
        %vm639 = vcmp.ne.s32.totalorder %v635, 0
        %vm640 = vcmp.lt.s32.totalorder %v614, 0
        %vm641 = vcmp.lt.s32.totalorder %v621, 0
        %vm642 = vcmp.lt.s32.totalorder %v628, 0
        %vm643 = vcmp.lt.s32.totalorder %v635, 0
        %vm644 = vmand %vm640, %vm636
        %vm645 = vmand %vm641, %vm637
        %vm646 = vmand %vm642, %vm638
        %vm647 = vmand %vm643, %vm639
        %v648 = vadd.s32 %v614, 8
        %v649 = vadd.s32 %v621, 8
        %v650 = vadd.s32 %v628, 8
        %v651 = vadd.s32 %v635, 8
        %v652 = vsel %vm644, %v648, %v614
        %v653 = vsel %vm645, %v649, %v621
        %v654 = vsel %vm646, %v650, %v628
        %v655 = vsel %vm647, %v651, %v635
        %vm656 = vcmp.ne.s32.totalorder %v652, 0
        %vm657 = vcmp.ne.s32.totalorder %v653, 0
        %vm658 = vcmp.ne.s32.totalorder %v654, 0
        %vm659 = vcmp.ne.s32.totalorder %v655, 0
        %vm660 = vcmp.ne.s32.totalorder %v652, 7
        %vm661 = vcmp.ne.s32.totalorder %v653, 7
        %vm662 = vcmp.ne.s32.totalorder %v654, 7
        %vm663 = vcmp.ne.s32.totalorder %v655, 7
        %v664 = vsel %vm656, 1, 0
        %v665 = vsel %vm657, 1, 0
        %v666 = vsel %vm658, 1, 0
        %v667 = vsel %vm659, 1, 0
        %vm668 = vcmp.eq.s32.totalorder %v664, 1
        %vm669 = vcmp.eq.s32.totalorder %v665, 1
        %vm670 = vcmp.eq.s32.totalorder %v666, 1
        %vm671 = vcmp.eq.s32.totalorder %v667, 1
        %v672 = vsel %vm668, %v606, 0.0
        %v673 = vsel %vm669, %v590, 0.0
        %v674 = vsel %vm670, %v592, 0.0
        %v675 = vsel %vm671, %v594, 0.0
        %v676 = vsel %vm660, 1, 0
        %v677 = vsel %vm661, 1, 0
        %v678 = vsel %vm662, 1, 0
        %v679 = vsel %vm663, 1, 0
        %vm680 = vcmp.eq.s32.totalorder %v676, 1
        %vm681 = vcmp.eq.s32.totalorder %v677, 1
        %vm682 = vcmp.eq.s32.totalorder %v678, 1
        %vm683 = vcmp.eq.s32.totalorder %v679, 1
        %vm685 = vcmask 1045504
        %v686 = vrot.slane %v606, 2
        %v687 = vrot.slane %v590, 2
        %v688 = vsel %vm685, %v686, %v687
        %v689 = vrot.slane %v592, 2
        %v690 = vsel %vm685, %v687, %v689
        %v691 = vrot.slane %v594, 2
        %v692 = vsel %vm685, %v689, %v691
        %v693 = vrot.slane %v596, 2
        %v694 = vsel %vm685, %v691, %v693
        %v699 = vsel %vm680, %v688, 0.0
        %v700 = vsel %vm681, %v690, 0.0
        %v701 = vsel %vm682, %v692, 0.0
        %v702 = vsel %vm683, %v694, 0.0
        %v703 = vsel %vm668, %v590, 0.0
        %v704 = vsel %vm669, %v592, 0.0
        %v705 = vsel %vm670, %v594, 0.0
        %v706 = vsel %vm671, %v596, 0.0
        %v707 = vrot.slane %v598, 2
        %v708 = vsel %vm685, %v693, %v707
        %v710 = vsel %vm680, %v690, 0.0
        %v711 = vsel %vm681, %v692, 0.0
        %v712 = vsel %vm682, %v694, 0.0
        %v713 = vsel %vm683, %v708, 0.0
        %v714 = vsel %vm668, %v592, 0.0
        %v715 = vsel %vm669, %v594, 0.0
        %v716 = vsel %vm670, %v596, 0.0
        %v717 = vsel %vm671, %v598, 0.0
        %v719 = vrot.slane %v607, 2
        %v720 = vsel %vm685, %v707, %v719
        %v722 = vsel %vm680, %v692, 0.0
        %v723 = vsel %vm681, %v694, 0.0
        %v724 = vsel %vm682, %v708, 0.0
        %v725 = vsel %vm683, %v720, 0.0
        %vm726 = vcmask 1046528
        %v727 = vrot.slane %v606, 1
        %v728 = vrot.slane %v590, 1
        %v729 = vsel %vm726, %v727, %v728
        %v730 = vrot.slane %v592, 1
        %v731 = vsel %vm726, %v728, %v730
        %v732 = vrot.slane %v594, 1
        %v733 = vsel %vm726, %v730, %v732
        %v734 = vrot.slane %v596, 1
        %v735 = vsel %vm726, %v732, %v734
        %736 = vrot.lane.b32.xlu0 %v729, 8
        %v737 = vpop.permute.xlu0 %736
        %738 = vrot.lane.b32.xlu0 %v731, 8
        %v739 = vpop.permute.xlu0 %738
        %740 = vrot.lane.b32.xlu0 %v733, 8
        %v741 = vpop.permute.xlu0 %740
        %742 = vrot.lane.b32.xlu0 %v735, 8
        %v743 = vpop.permute.xlu0 %742
        %752 = vrot.lane.b32.xlu0 %v699, 16
        %v753 = vpop.permute.xlu0 %752
        %754 = vrot.lane.b32.xlu0 %v700, 16
        %v755 = vpop.permute.xlu0 %754
        %756 = vrot.lane.b32.xlu0 %v701, 16
        %v757 = vpop.permute.xlu0 %756
        %758 = vrot.lane.b32.xlu0 %v702, 16
        %v759 = vpop.permute.xlu0 %758
        %768 = vrot.lane.b32.xlu0 %v703, 24
        %v769 = vpop.permute.xlu0 %768
        %770 = vrot.lane.b32.xlu0 %v704, 24
        %v771 = vpop.permute.xlu0 %770
        %772 = vrot.lane.b32.xlu0 %v705, 24
        %v773 = vpop.permute.xlu0 %772
        %774 = vrot.lane.b32.xlu0 %v706, 24
        %v775 = vpop.permute.xlu0 %774
        %v780 = vrot.slane %v598, 1
        %v781 = vsel %vm726, %v734, %v780
        %782 = vrot.lane.b32.xlu0 %v731, 32
        %v783 = vpop.permute.xlu0 %782
        %784 = vrot.lane.b32.xlu0 %v733, 32
        %v785 = vpop.permute.xlu0 %784
        %786 = vrot.lane.b32.xlu0 %v735, 32
        %v787 = vpop.permute.xlu0 %786
        %788 = vrot.lane.b32.xlu0 %v781, 32
        %v789 = vpop.permute.xlu0 %788
        %798 = vrot.lane.b32.xlu0 %v710, 40
        %v799 = vpop.permute.xlu0 %798
        %800 = vrot.lane.b32.xlu0 %v711, 40
        %v801 = vpop.permute.xlu0 %800
        %802 = vrot.lane.b32.xlu0 %v712, 40
        %v803 = vpop.permute.xlu0 %802
        %804 = vrot.lane.b32.xlu0 %v713, 40
        %v805 = vpop.permute.xlu0 %804
        %814 = vrot.lane.b32.xlu0 %v714, 48
        %v815 = vpop.permute.xlu0 %814
        %816 = vrot.lane.b32.xlu0 %v715, 48
        %v817 = vpop.permute.xlu0 %816
        %818 = vrot.lane.b32.xlu0 %v716, 48
        %v819 = vpop.permute.xlu0 %818
        %820 = vrot.lane.b32.xlu0 %v717, 48
        %v821 = vpop.permute.xlu0 %820
        %v826 = vrot.slane %v607, 1
        %v827 = vsel %vm726, %v780, %v826
        %828 = vrot.lane.b32.xlu0 %v733, 56
        %v829 = vpop.permute.xlu0 %828
        %830 = vrot.lane.b32.xlu0 %v735, 56
        %v831 = vpop.permute.xlu0 %830
        %832 = vrot.lane.b32.xlu0 %v781, 56
        %v833 = vpop.permute.xlu0 %832
        %834 = vrot.lane.b32.xlu0 %v827, 56
        %v835 = vpop.permute.xlu0 %834
        %844 = vrot.lane.b32.xlu0 %v722, 64
        %v845 = vpop.permute.xlu0 %844
        %846 = vrot.lane.b32.xlu0 %v723, 64
        %v847 = vpop.permute.xlu0 %846
        %848 = vrot.lane.b32.xlu0 %v724, 64
        %v849 = vpop.permute.xlu0 %848
        %850 = vrot.lane.b32.xlu0 %v725, 64
        %v851 = vpop.permute.xlu0 %850
        %vm856 = vcmask 64512
        %v857 = vsel %vm856, %v672, %v737
        %v858 = vsel %vm856, %v673, %v739
        %v859 = vsel %vm856, %v674, %v741
        %v860 = vsel %vm856, %v675, %v743
        %v861 = vsel %vm446, %v857, %v753
        %v862 = vsel %vm446, %v858, %v755
        %v863 = vsel %vm446, %v859, %v757
        %v864 = vsel %vm446, %v860, %v759
        %vm865 = vcmask 195584
        %v866 = vsel %vm865, %v861, %v769
        %v867 = vsel %vm865, %v862, %v771
        %v868 = vsel %vm865, %v863, %v773
        %v869 = vsel %vm865, %v864, %v775
        %vm870 = vcmask 261120
        %v871 = vsel %vm870, %v866, %v783
        %v872 = vsel %vm870, %v867, %v785
        %v873 = vsel %vm870, %v868, %v787
        %v874 = vsel %vm870, %v869, %v789
        %vm875 = vcmask 326656
        %v876 = vsel %vm875, %v871, %v799
        %v877 = vsel %vm875, %v872, %v801
        %v878 = vsel %vm875, %v873, %v803
        %v879 = vsel %vm875, %v874, %v805
        %vm880 = vcmask 392192
        %v881 = vsel %vm880, %v876, %v815
        %v882 = vsel %vm880, %v877, %v817
        %v883 = vsel %vm880, %v878, %v819
        %v884 = vsel %vm880, %v879, %v821
        %vm885 = vcmask 457728
        %v886 = vsel %vm885, %v881, %v829
        %v887 = vsel %vm885, %v882, %v831
        %v888 = vsel %vm885, %v883, %v833
        %v889 = vsel %vm885, %v884, %v835
        %vm890 = vcmask 523264
        %v891 = vsel %vm890, %v886, %v845
        %v892 = vsel %vm890, %v887, %v847
        %v893 = vsel %vm890, %v888, %v849
        %v894 = vsel %vm890, %v889, %v851
        %v895 = vld [vmem:[%s5] sm:$0xff]
        %v896 = vld [vmem:[%s5 + $0x8] sm:$0xff]
        %v897 = vld [vmem:[%s5 + $0x10] sm:$0xff]
        %v898 = vld [vmem:[%s5 + $0x18] sm:$0xff]
        %v899 = vld [vmem:[%s5 + $0x20] sm:$0xff]
        %v900 = vld [vmem:[%s5 + $0x28] sm:$0xff]
        %v901 = vld [vmem:[%s5 + $0x30] sm:$0xff]
        %v902 = vld [vmem:[%s5 + $0x38] sm:$0xff]
        %v903 = vld [vmem:[%s5 + $0x40] sm:$0xff]
        %v904 = vld [vmem:[%s6] sm:$0x1]
        %v906 = vperm.slane %v904, 0
        %vm908 = vcmask 588800
        %v910 = vsel %vm908, %v891, 0
        %v913 = vsel %vm908, %v892, 0
        %v916 = vsel %vm908, %v893, 0
        %v919 = vsel %vm908, %v894, 0
        %921 = vmatpush.msra.mxu0 0.0
        %922 = vmatpush.msra.mxu0 0.0
        %923 = vmatpush.msra.mxu0 0.0
        %924 = vmatpush.msra.mxu0 0.0
        %925 = vmatpush.msra.mxu0 0.0
        %926 = vmatpush.msra.mxu0 0.0
        %927 = vmatpush.msra.mxu0 0.0
        %928 = vmatpush.msra.mxu0 %v903
        %929 = vmatpush.msra.mxu0 %v902
        %930 = vmatpush.msra.mxu0 %v901
        %931 = vmatpush.msra.mxu0 %v900
        %932 = vmatpush.msra.mxu0 %v899
        %933 = vmatpush.msra.mxu0 %v898
        %934 = vmatpush.msra.mxu0 %v897
        %935 = vmatpush.msra.mxu0 %v896
        %936 = vmatpush.msra.mxu0 %v895
        %937 = vmatmul.f32.gmra.mxu0 %v910
        %v938 = vpop.f32.mrf.mxu0
        %v939 = vadd.f32 %v906, %v938
        %940 = vmatmul.f32.gmra.mxu0 %v913
        %v941 = vpop.f32.mrf.mxu0
        %v942 = vadd.f32 %v906, %v941
        %943 = vmatmul.f32.gmra.mxu0 %v916
        %v944 = vpop.f32.mrf.mxu0
        %v945 = vadd.f32 %v906, %v944
        %946 = vmatmul.f32.gmra.mxu0 %v919
        %v947 = vpop.f32.mrf.mxu0
        %v948 = vadd.f32 %v906, %v947
        %949 = vdwg.mxu0
        %vm950 = vcmp.gt.f32.partialorder %v939, 0.0
        %vm951 = vcmp.gt.f32.partialorder %v942, 0.0
        %vm952 = vcmp.gt.f32.partialorder %v945, 0.0
        %vm953 = vcmp.gt.f32.partialorder %v948, 0.0
        %v954 = vmul.f32 %v939, 0.01
        %v955 = vmul.f32 %v942, 0.01
        %v956 = vmul.f32 %v945, 0.01
        %v957 = vmul.f32 %v948, 0.01
        %v958 = vsel %vm950, %v939, %v954
        %v959 = vsel %vm951, %v942, %v955
        %v960 = vsel %vm952, %v945, %v956
        %v961 = vsel %vm953, %v948, %v957
        %v962 = vadd.f32 %v958, %v434
        %v963 = vadd.f32 %v959, %v435
        %v964 = vadd.f32 %v960, %v436
        %v965 = vadd.f32 %v961, %v437
        %966 = vst.msk [vmem:[%s423] sm:$0xff] %vm446, %v962
        %967 = vst.msk [vmem:[%s423 + $0x8] sm:$0xff] %vm446, %v963
        %968 = vst.msk [vmem:[%s423 + $0x10] sm:$0xff] %vm446, %v964
        %969 = vst.msk [vmem:[%s423 + $0x18] sm:$0xff] %vm446, %v965
        %s970 = sand.u32 %s233, 1
        %s971 = scalar_lea.sflag [#allocation4], %s970
        %s972 = sand.u32 %s233, 1
        %s973 = smul.addr %s972, 32
        %s974 = scalar_lea.vmem [#allocation8], %s973
        // Predicated region
        $region61: #{tpu_custom_call.1} parent=47 // pred_check
          %p975 = pneg %p243
        $region62: #{tpu_custom_call.1} parent=47 // pred_check_branch
          %977 = sbr.rel (%p975) target = $region64
        $region63: #{tpu_custom_call.1} parent=47 // pred_region
          %s978 = smul.u32 4, %s32
          %980 = vsyncadd %s971, 0
          %s981 = smul.addr %s31, 8
          %s982 = sadd.s32 %s978, %s981
          %s983 = smul.addr %s982, 8
          %s984 = scalar_lea.hbm %s7, %s983
          %s985 = sshll.u32 %s974, 4
          %s986 = int_to_ptr.vmem [resolvable:$true] %s985
          %s987 = sshll.u32 %s984, 4
          %s988 = int_to_ptr.hbm [resolvable:$true] %s987
          %993 = dma.vmem_to_hbm [thread:$0]  %s986, 512, %s988, %s971, 128, 128, 8
        $region64: #{tpu_custom_call.1} parent=47 // pred_fallthru
          _
      $region48: #{tpu_custom_call.1} parent=5 // pred_fallthru
        _
      %p994 = scmp.le.s32.totalorder 2, %s22
      // Predicated region
      $region65: #{tpu_custom_call.1} parent=5 // pred_check
        %p995 = pneg %p994
      $region66: #{tpu_custom_call.1} parent=5 // pred_check_branch
        %997 = sbr.rel (%p995) target = $region68
      $region67: #{tpu_custom_call.1} parent=5 // pred_region
        %s998 = ssub.s32 %s22, 2
        // Predicated region
        $region69: #{tpu_custom_call.1} parent=67 // pred_check
          %p999 = pneg %p249
        $region70: #{tpu_custom_call.1} parent=67 // pred_check_branch
          %1001 = sbr.rel (%p999) target = $region72
        $region71: #{tpu_custom_call.1} parent=67 // pred_region
          %s1002 = sand.u32 %s234, 1
          %s1003 = scalar_lea.sflag [#allocation4], %s1002
          %s1004 = sand.u32 %s234, 1
          %s1005 = smul.addr %s1004, 32
          %s1006 = scalar_lea.vmem [#allocation8], %s1005
          %1008 = dma.done %s1003, 512
        $region72: #{tpu_custom_call.1} parent=67 // pred_fallthru
          _
      $region68: #{tpu_custom_call.1} parent=5 // pred_fallthru
        _
    $region6: #{tpu_custom_call.1} parent=1 // loop_footer
      %s26 = sadd.s32 1, %s22
    $region7: #{tpu_custom_call.1} parent=1 // loop_footer_branch
      %21 = sbr.rel target = $region3
    $region8: #{tpu_custom_call.1} parent=1 // loop_exit
      _
    %1009 = vsyncpa [#allocation3], 1
    %s1010 = scalar_lea.sflag [#allocation3], 1
    %1011 = vsyncpa %s1010, 1
    %1012 = vsyncpa [#allocation6], 1
    %s1013 = scalar_lea.sflag [#allocation6], 1
    %1014 = vsyncpa %s1013, 1
    %1015 = vsyncpa [#allocation4], 1
    %s1016 = scalar_lea.sflag [#allocation4], 1
    %1017 = vsyncpa %s1016, 1

</llo_original>
